<compile_context>
chip_gen: v5e
topology: v5e:2x2
jax: 0.10.0
libtpu: 0.0.40
codegen_flags: <defaults>
</compile_context>

<pallas_src>
import jax
import jax.numpy as jnp
from jax.experimental import pallas as pl
from jax.experimental.pallas import tpu as pltpu

_LANE = 128      # last-dim tile (lane width)
_SUBLANE = 8     # second-to-last-dim tile for f32


def _round_up(x, m):
    return ((x + m - 1) // m) * m


def autocoder_kernel(x_ref, we_ref, be_ref, wd_ref, bd_ref, enc_ref, dec_ref):
    # One (TB, 128)-shaped batch tile; both matmuls hit the MXU with a real
    # 128-wide contraction, bias adds run on the VPU, stores are lane-dense.
    x = x_ref[...]
    enc_f32 = jnp.dot(x, we_ref[...], preferred_element_type=jnp.float32) + be_ref[...]
    enc = enc_f32.astype(enc_ref.dtype)
    dec_f32 = jnp.dot(enc.astype(wd_ref.dtype), wd_ref[...],
                      preferred_element_type=jnp.float32) + bd_ref[...]
    enc_ref[...] = enc
    dec_ref[...] = dec_f32.astype(dec_ref.dtype)


def autocoder_forward(x, w_enc, b_enc, w_dec, b_dec, *, batch_tile=256):
    """x: (B, input_dim); w_enc: (input_dim, enc); w_dec: (enc, input_dim).
    Biases may be (dim,) or (1, dim). Returns (encode, decode)."""
    B, D = x.shape
    E = w_enc.shape[1]
    dtype = x.dtype

    # Pad feature dims to the 128-lane grid (lane-dense MXU + stores).
    D_pad = _round_up(D, _LANE)
    E_pad = _round_up(E, _LANE)

    # Batch tile: multiple of 8 sublanes, capped by the (padded) batch.
    B8 = _round_up(B, _SUBLANE)
    TB = _round_up(min(batch_tile, B8), _SUBLANE)
    B_pad = _round_up(B8, TB)
    grid = (B_pad // TB,)

    # Zero padding keeps the math identical on the live [:B, :D]/[:B, :E] slice.
    x_p = jnp.zeros((B_pad, D_pad), dtype).at[:B, :D].set(x)
    we_p = jnp.zeros((D_pad, E_pad), w_enc.dtype).at[:D, :E].set(w_enc)
    be_p = jnp.zeros((1, E_pad), b_enc.dtype).at[:, :E].set(jnp.reshape(b_enc, (1, E)))
    wd_p = jnp.zeros((E_pad, D_pad), w_dec.dtype).at[:E, :D].set(w_dec)
    bd_p = jnp.zeros((1, D_pad), b_dec.dtype).at[:, :D].set(jnp.reshape(b_dec, (1, D)))

    itemsize = jnp.dtype(dtype).itemsize
    flops = 2 * B_pad * (D_pad * E_pad + E_pad * D_pad)
    bytes_accessed = (x_p.size + we_p.size + be_p.size + wd_p.size + bd_p.size
                      + B_pad * E_pad + B_pad * D_pad) * itemsize

    enc_pad, dec_pad = pl.pallas_call(
        autocoder_kernel,
        out_shape=(jax.ShapeDtypeStruct((B_pad, E_pad), dtype),
                   jax.ShapeDtypeStruct((B_pad, D_pad), dtype)),
        grid_spec=pltpu.PrefetchScalarGridSpec(
            num_scalar_prefetch=0,
            grid=grid,
            in_specs=[
                pl.BlockSpec((TB, D_pad), lambda i: (i, 0)),     # x tile (streamed)
                pl.BlockSpec((D_pad, E_pad), lambda i: (0, 0)),  # encoder W (resident)
                pl.BlockSpec((1, E_pad), lambda i: (0, 0)),      # encoder b (resident)
                pl.BlockSpec((E_pad, D_pad), lambda i: (0, 0)),  # decoder W (resident)
                pl.BlockSpec((1, D_pad), lambda i: (0, 0)),      # decoder b (resident)
            ],
            out_specs=[
                pl.BlockSpec((TB, E_pad), lambda i: (i, 0)),     # encode tile
                pl.BlockSpec((TB, D_pad), lambda i: (i, 0)),     # decode tile
            ],
        ),
        compiler_params=pltpu.CompilerParams(
            dimension_semantics=("parallel",),
        ),
        cost_estimate=pl.CostEstimate(
            flops=flops, transcendentals=0, bytes_accessed=bytes_accessed),
    )(x_p, we_p, be_p, wd_p, bd_p)

    return enc_pad[:B, :E], dec_pad[:B, :D]


def init_params(key, input_dim=4, encoder_size=2, dtype=jnp.float32):
    """Deterministic init mimicking nn.Linear's U(-1/sqrt(fan_in), 1/sqrt(fan_in))."""
    k1, k2, k3, k4 = jax.random.split(key, 4)
    bound_e = 1.0 / jnp.sqrt(input_dim)
    bound_d = 1.0 / jnp.sqrt(encoder_size)
    # Stored as (in, out) — transposed relative to PyTorch's (out, in) weight.
    w_enc = jax.random.uniform(k1, (input_dim, encoder_size), dtype,
                               minval=-bound_e, maxval=bound_e)
    b_enc = jax.random.uniform(k2, (1, encoder_size), dtype,
                               minval=-bound_e, maxval=bound_e)
    w_dec = jax.random.uniform(k3, (encoder_size, input_dim), dtype,
                               minval=-bound_d, maxval=bound_d)
    b_dec = jax.random.uniform(k4, (1, input_dim), dtype,
                               minval=-bound_d, maxval=bound_d)
    return w_enc, b_enc, w_dec, b_dec


if __name__ == "__main__":
    key = jax.random.PRNGKey(0)
    k_x, k_p = jax.random.split(key)

    batch, input_dim, encoder_size = 8, 4, 2
    x = jax.random.normal(k_x, (batch, input_dim), dtype=jnp.float32)
    w_enc, b_enc, w_dec, b_dec = init_params(k_p, input_dim, encoder_size)

    encode, decode = autocoder_forward(x, w_enc, b_enc, w_dec, b_dec)
    jax.block_until_ready((encode, decode))

    # Pure-JAX reference check (same semantics as the PyTorch forward).
    enc_ref = x @ w_enc + b_enc
    dec_ref = enc_ref @ w_dec + b_dec
    assert encode.shape == (batch, encoder_size)
    assert decode.shape == (batch, input_dim)
    assert jnp.allclose(encode, enc_ref, atol=1e-5, rtol=1e-5)
    assert jnp.allclose(decode, dec_ref, atol=1e-5, rtol=1e-5)

    print("KERNEL_OK")
</pallas_src>

<mosaic_0001>
module attributes {stable_mosaic.version = 11 : i64} {
  func.func @autocoder_kernel(%arg0: i32, %arg1: memref<8x128xf32, #tpu.memory_space<vmem>>, %arg2: memref<128x128xf32, #tpu.memory_space<vmem>>, %arg3: memref<1x128xf32, #tpu.memory_space<vmem>>, %arg4: memref<128x128xf32, #tpu.memory_space<vmem>>, %arg5: memref<1x128xf32, #tpu.memory_space<vmem>>, %arg6: memref<8x128xf32, #tpu.memory_space<vmem>>, %arg7: memref<8x128xf32, #tpu.memory_space<vmem>>) attributes {dimension_semantics = [#tpu.dimension_semantics<parallel>], iteration_bounds = array<i64: 1>, scalar_prefetch = 0 : i64, scratch_operands = 0 : i64, tpu.core_type = #tpu.core_type<tc>, window_params = [{transform_indices = @transform_0, window_bounds = array<i64: 8, 128>}, {pipeline_mode = #tpu.pipeline_mode<synchronous>, transform_indices = @transform_1, window_bounds = array<i64: 128, 128>}, {pipeline_mode = #tpu.pipeline_mode<synchronous>, transform_indices = @transform_2, window_bounds = array<i64: 1, 128>}, {pipeline_mode = #tpu.pipeline_mode<synchronous>, transform_indices = @transform_3, window_bounds = array<i64: 128, 128>}, {pipeline_mode = #tpu.pipeline_mode<synchronous>, transform_indices = @transform_4, window_bounds = array<i64: 1, 128>}, {transform_indices = @transform_5, window_bounds = array<i64: 8, 128>}, {transform_indices = @transform_6, window_bounds = array<i64: 8, 128>}]} {
    %c0 = arith.constant 0 : index
    %c0_0 = arith.constant 0 : index
    %0 = vector.load %arg1[%c0, %c0_0] : memref<8x128xf32, #tpu.memory_space<vmem>>, vector<8x128xf32>
    %c0_1 = arith.constant 0 : index
    %c0_2 = arith.constant 0 : index
    %1 = vector.load %arg2[%c0_1, %c0_2] : memref<128x128xf32, #tpu.memory_space<vmem>>, vector<128x128xf32>
    %cst = arith.constant dense<0.000000e+00> : vector<8x128xf32>
    %2 = tpu.matmul %0, %1, %cst {dimension_numbers = #tpu.dot_dimension_numbers<[1], [0], [0], [1], [0, 0, 1, 1], [], []>} : vector<8x128xf32>, vector<128x128xf32>, vector<8x128xf32> -> vector<8x128xf32>
    %c0_3 = arith.constant 0 : index
    %c0_4 = arith.constant 0 : index
    %3 = vector.load %arg3[%c0_3, %c0_4] : memref<1x128xf32, #tpu.memory_space<vmem>>, vector<1x128xf32>
    %4 = vector.broadcast %3 : vector<1x128xf32> to vector<8x128xf32>
    %5 = arith.addf %2, %4 : vector<8x128xf32>
    %c0_5 = arith.constant 0 : index
    %c0_6 = arith.constant 0 : index
    %6 = vector.load %arg4[%c0_5, %c0_6] : memref<128x128xf32, #tpu.memory_space<vmem>>, vector<128x128xf32>
    %cst_7 = arith.constant dense<0.000000e+00> : vector<8x128xf32>
    %7 = tpu.matmul %5, %6, %cst_7 {dimension_numbers = #tpu.dot_dimension_numbers<[1], [0], [0], [1], [0, 0, 1, 1], [], []>} : vector<8x128xf32>, vector<128x128xf32>, vector<8x128xf32> -> vector<8x128xf32>
    %c0_8 = arith.constant 0 : index
    %c0_9 = arith.constant 0 : index
    %8 = vector.load %arg5[%c0_8, %c0_9] : memref<1x128xf32, #tpu.memory_space<vmem>>, vector<1x128xf32>
    %9 = vector.broadcast %8 : vector<1x128xf32> to vector<8x128xf32>
    %10 = arith.addf %7, %9 : vector<8x128xf32>
    %c0_10 = arith.constant 0 : index
    %c0_11 = arith.constant 0 : index
    %11 = vector.load %arg6[%c0_10, %c0_11] : memref<8x128xf32, #tpu.memory_space<vmem>>, vector<8x128xf32>
    tpu.vector_store %arg6[%c0_10, %c0_11], %5 {strides = array<i32>} : memref<8x128xf32, #tpu.memory_space<vmem>>, vector<8x128xf32>,
    %c0_12 = arith.constant 0 : index
    %c0_13 = arith.constant 0 : index
    %12 = vector.load %arg7[%c0_12, %c0_13] : memref<8x128xf32, #tpu.memory_space<vmem>>, vector<8x128xf32>
    tpu.vector_store %arg7[%c0_12, %c0_13], %10 {strides = array<i32>} : memref<8x128xf32, #tpu.memory_space<vmem>>, vector<8x128xf32>,
    return
  }
  func.func @transform_0(%arg0: i32) -> (i32, i32) {
    %c0_i32 = arith.constant 0 : i32
    %c0_i32_0 = arith.constant 0 : i32
    return %arg0, %c0_i32 : i32, i32
  }
  func.func @transform_1(%arg0: i32) -> (i32, i32) {
    %c0_i32 = arith.constant 0 : i32
    %c0_i32_0 = arith.constant 0 : i32
    %c0_i32_1 = arith.constant 0 : i32
    return %c0_i32, %c0_i32_0 : i32, i32
  }
  func.func @transform_2(%arg0: i32) -> (i32, i32) {
    %c0_i32 = arith.constant 0 : i32
    %c0_i32_0 = arith.constant 0 : i32
    %c0_i32_1 = arith.constant 0 : i32
    return %c0_i32, %c0_i32_0 : i32, i32
  }
  func.func @transform_3(%arg0: i32) -> (i32, i32) {
    %c0_i32 = arith.constant 0 : i32
    %c0_i32_0 = arith.constant 0 : i32
    %c0_i32_1 = arith.constant 0 : i32
    return %c0_i32, %c0_i32_0 : i32, i32
  }
  func.func @transform_4(%arg0: i32) -> (i32, i32) {
    %c0_i32 = arith.constant 0 : i32
    %c0_i32_0 = arith.constant 0 : i32
    %c0_i32_1 = arith.constant 0 : i32
    return %c0_i32, %c0_i32_0 : i32, i32
  }
  func.func @transform_5(%arg0: i32) -> (i32, i32) {
    %c0_i32 = arith.constant 0 : i32
    %c0_i32_0 = arith.constant 0 : i32
    return %arg0, %c0_i32 : i32, i32
  }
  func.func @transform_6(%arg0: i32) -> (i32, i32) {
    %c0_i32 = arith.constant 0 : i32
    %c0_i32_0 = arith.constant 0 : i32
    return %arg0, %c0_i32 : i32, i32
  }
}

</mosaic_0001>

<llo_original>
// kernel: tpu_custom_call.1
$region0: #{tpu_custom_call.1}
  #allocation0 [shape = 'u32[]', space=smem, size = 0x4, offset = 0x4, fixed_abs, tag = 'smem constant byte address 0x4 - core index']
  #allocation1 [shape = 'u32[72,128]{1,0:T(1,128)}', space=vmem, size = 0x9000, scoped, tag = 'internal scratch']
  %s0 = inlined_call_operand.hbm [shape: f32[8,128], index: 0, kind: input, shape index: {}]
  %s1 = inlined_call_operand.hbm [shape: f32[128,128], index: 1, kind: input, shape index: {}]
  %s2 = inlined_call_operand.vmem [shape: f32[1,128], index: 2, kind: input, shape index: {}]
  %s3 = inlined_call_operand.hbm [shape: f32[128,128], index: 3, kind: input, shape index: {}]
  %s4 = inlined_call_operand.vmem [shape: f32[1,128], index: 4, kind: input, shape index: {}]
  %s5 = inlined_call_operand.hbm [shape: f32[8,128], index: 5, kind: output, shape index: {0}]
  %s6 = inlined_call_operand.hbm [shape: f32[8,128], index: 6, kind: output, shape index: {1}]
  %7 = xla_tuple %s5, %s6
  %s8 = sld [smem:[#allocation0]]
  $region50: #{tpu_custom_call.1} parent=0
    _
  %s10 = ssub.s32 1, %s8
  %s11 = scalar_select 0, %s10, %s8
  $region1: #{tpu_custom_call.1} parent=0
    #allocation2 [shape = 'u8[4096]{0}', space=vmem, size = 0x1000, scoped, tag = 'input window, operand 0, single buffered']
    #allocation3 [shape = 's32[1]{0}', space=sflag, size = 0x4, scoped, tag = 'scoped memory for tpu_custom_call.1']
    #allocation4 [shape = 's32[1]{0}', space=sflag, size = 0x4, scoped, tag = 'scoped memory for tpu_custom_call.1']
    #allocation5 [shape = 'u8[65536]{0}', space=vmem, size = 0x10000, scoped, tag = 'input window, operand 1, single buffered']
    #allocation6 [shape = 's32[1]{0}', space=sflag, size = 0x4, scoped, tag = 'scoped memory for tpu_custom_call.1']
    #allocation7 [shape = 'u8[65536]{0}', space=vmem, size = 0x10000, scoped, tag = 'input window, operand 3, single buffered']
    #allocation8 [shape = 'u8[4096]{0}', space=vmem, size = 0x1000, scoped, tag = 'output window, operand 0, single buffered']
    #allocation9 [shape = 'u8[4096]{0}', space=vmem, size = 0x1000, scoped, tag = 'output window, operand 1, single buffered']
    #allocation10 [shape = 's32[1]{0}', space=sflag, size = 0x4, scoped, tag = 'scoped memory for tpu_custom_call.1']
    %12 = vsyncpa [#allocation3], 0
    %13 = vsyncpa [#allocation6], 0
    %14 = vsyncpa [#allocation4], 0
    %15 = vsyncpa [#allocation10], 0
    // Predicated region
    $region2: #{tpu_custom_call.1} parent=1 // pred_check
      _
    $region3: #{tpu_custom_call.1} parent=1 // pred_check_branch
      %17 = sbr.rel (0) target = $region5
    $region4: #{tpu_custom_call.1} parent=1 // pred_region
      %19 = vsyncadd [#allocation3], 0
      %s21 = sshll.u32 %s0, 4
      %s22 = int_to_ptr.hbm [resolvable:$true] %s21
      %s23 = sshll.u32 [#allocation2], 4
      %s24 = int_to_ptr.vmem [resolvable:$true] %s23
      %26 = dma.hbm_to_vmem [thread:$0]  %s22, 128, %s24, [#allocation3]
    $region5: #{tpu_custom_call.1} parent=1 // pred_fallthru
      _
    // Predicated region
    $region6: #{tpu_custom_call.1} parent=1 // pred_check
      _
    $region7: #{tpu_custom_call.1} parent=1 // pred_check_branch
      %28 = sbr.rel (0) target = $region9
    $region8: #{tpu_custom_call.1} parent=1 // pred_region
      %30 = vsyncadd [#allocation6], 0
      %s31 = sshll.u32 %s1, 4
      %s32 = int_to_ptr.hbm [resolvable:$true] %s31
      %s33 = sshll.u32 [#allocation5], 4
      %s34 = int_to_ptr.vmem [resolvable:$true] %s33
      %39 = dma.hbm_to_vmem [thread:$0]  %s32, 2048, %s34, [#allocation6], 128, 128, 8
    $region9: #{tpu_custom_call.1} parent=1 // pred_fallthru
      _
    // Predicated region
    $region10: #{tpu_custom_call.1} parent=1 // pred_check
      _
    $region11: #{tpu_custom_call.1} parent=1 // pred_check_branch
      %41 = sbr.rel (0) target = $region13
    $region12: #{tpu_custom_call.1} parent=1 // pred_region
      _
    $region13: #{tpu_custom_call.1} parent=1 // pred_fallthru
      _
    // Predicated region
    $region14: #{tpu_custom_call.1} parent=1 // pred_check
      _
    $region15: #{tpu_custom_call.1} parent=1 // pred_check_branch
      %43 = sbr.rel (0) target = $region17
    $region16: #{tpu_custom_call.1} parent=1 // pred_region
      %45 = vsyncadd [#allocation6], 0
      %s46 = sshll.u32 %s3, 4
      %s47 = int_to_ptr.hbm [resolvable:$true] %s46
      %s48 = sshll.u32 [#allocation7], 4
      %s49 = int_to_ptr.vmem [resolvable:$true] %s48
      %54 = dma.hbm_to_vmem [thread:$0]  %s47, 2048, %s49, [#allocation6], 128, 128, 8
    $region17: #{tpu_custom_call.1} parent=1 // pred_fallthru
      _
    // Predicated region
    $region18: #{tpu_custom_call.1} parent=1 // pred_check
      _
    $region19: #{tpu_custom_call.1} parent=1 // pred_check_branch
      %56 = sbr.rel (0) target = $region21
    $region20: #{tpu_custom_call.1} parent=1 // pred_region
      _
    $region21: #{tpu_custom_call.1} parent=1 // pred_fallthru
      _
    // Predicated region
    $region22: #{tpu_custom_call.1} parent=1 // pred_check
      _
    $region23: #{tpu_custom_call.1} parent=1 // pred_check_branch
      %58 = sbr.rel (0) target = $region25
    $region24: #{tpu_custom_call.1} parent=1 // pred_region
      %60 = dma.done [#allocation3], 128
    $region25: #{tpu_custom_call.1} parent=1 // pred_fallthru
      _
    // Predicated region
    $region26: #{tpu_custom_call.1} parent=1 // pred_check
      _
    $region27: #{tpu_custom_call.1} parent=1 // pred_check_branch
      %62 = sbr.rel (0) target = $region29
    $region28: #{tpu_custom_call.1} parent=1 // pred_region
      %64 = dma.done [#allocation6], 2048
    $region29: #{tpu_custom_call.1} parent=1 // pred_fallthru
      _
    // Predicated region
    $region30: #{tpu_custom_call.1} parent=1 // pred_check
      _
    $region31: #{tpu_custom_call.1} parent=1 // pred_check_branch
      %66 = sbr.rel (0) target = $region33
    $region32: #{tpu_custom_call.1} parent=1 // pred_region
      %68 = dma.done [#allocation6], 2048
    $region33: #{tpu_custom_call.1} parent=1 // pred_fallthru
      _
    %v69 = vld [vmem:[#allocation2] sm:$0xff]
    %v70 = vld [vmem:[#allocation5] sm:$0xff]
    %v71 = vld [vmem:[#allocation5 + $0x8] sm:$0xff]
    %v72 = vld [vmem:[#allocation5 + $0x10] sm:$0xff]
    %v73 = vld [vmem:[#allocation5 + $0x18] sm:$0xff]
    %v74 = vld [vmem:[#allocation5 + $0x20] sm:$0xff]
    %v75 = vld [vmem:[#allocation5 + $0x28] sm:$0xff]
    %v76 = vld [vmem:[#allocation5 + $0x30] sm:$0xff]
    %v77 = vld [vmem:[#allocation5 + $0x38] sm:$0xff]
    %v78 = vld [vmem:[#allocation5 + $0x40] sm:$0xff]
    %v79 = vld [vmem:[#allocation5 + $0x48] sm:$0xff]
    %v80 = vld [vmem:[#allocation5 + $0x50] sm:$0xff]
    %v81 = vld [vmem:[#allocation5 + $0x58] sm:$0xff]
    %v82 = vld [vmem:[#allocation5 + $0x60] sm:$0xff]
    %v83 = vld [vmem:[#allocation5 + $0x68] sm:$0xff]
    %v84 = vld [vmem:[#allocation5 + $0x70] sm:$0xff]
    %v85 = vld [vmem:[#allocation5 + $0x78] sm:$0xff]
    %v86 = vld [vmem:[%s2] sm:$0x1]
    %v88 = vperm.slane %v86, 0
    %90 = vmatpush.msra.mxu0 %v85
    %91 = vmatpush.msra.mxu0 %v84
    %92 = vmatpush.msra.mxu0 %v83
    %93 = vmatpush.msra.mxu0 %v82
    %94 = vmatpush.msra.mxu0 %v81
    %95 = vmatpush.msra.mxu0 %v80
    %96 = vmatpush.msra.mxu0 %v79
    %97 = vmatpush.msra.mxu0 %v78
    %98 = vmatpush.msra.mxu0 %v77
    %99 = vmatpush.msra.mxu0 %v76
    %100 = vmatpush.msra.mxu0 %v75
    %101 = vmatpush.msra.mxu0 %v74
    %102 = vmatpush.msra.mxu0 %v73
    %103 = vmatpush.msra.mxu0 %v72
    %104 = vmatpush.msra.mxu0 %v71
    %105 = vmatpush.msra.mxu0 %v70
    %106 = vmatmul.f32.gmra.mxu0 %v69
    %v107 = vpop.f32.mrf.mxu0
    %v108 = vadd.f32 %v88, %v107
    %109 = vdwg.mxu0
    %v110 = vld [vmem:[#allocation7] sm:$0xff]
    %v111 = vld [vmem:[#allocation7 + $0x8] sm:$0xff]
    %v112 = vld [vmem:[#allocation7 + $0x10] sm:$0xff]
    %v113 = vld [vmem:[#allocation7 + $0x18] sm:$0xff]
    %v114 = vld [vmem:[#allocation7 + $0x20] sm:$0xff]
    %v115 = vld [vmem:[#allocation7 + $0x28] sm:$0xff]
    %v116 = vld [vmem:[#allocation7 + $0x30] sm:$0xff]
    %v117 = vld [vmem:[#allocation7 + $0x38] sm:$0xff]
    %v118 = vld [vmem:[#allocation7 + $0x40] sm:$0xff]
    %v119 = vld [vmem:[#allocation7 + $0x48] sm:$0xff]
    %v120 = vld [vmem:[#allocation7 + $0x50] sm:$0xff]
    %v121 = vld [vmem:[#allocation7 + $0x58] sm:$0xff]
    %v122 = vld [vmem:[#allocation7 + $0x60] sm:$0xff]
    %v123 = vld [vmem:[#allocation7 + $0x68] sm:$0xff]
    %v124 = vld [vmem:[#allocation7 + $0x70] sm:$0xff]
    %v125 = vld [vmem:[#allocation7 + $0x78] sm:$0xff]
    %v126 = vld [vmem:[%s4] sm:$0x1]
    %v128 = vperm.slane %v126, 0
    %130 = vmatpush.msra.mxu0 %v125
    %131 = vmatpush.msra.mxu0 %v124
    %132 = vmatpush.msra.mxu0 %v123
    %133 = vmatpush.msra.mxu0 %v122
    %134 = vmatpush.msra.mxu0 %v121
    %135 = vmatpush.msra.mxu0 %v120
    %136 = vmatpush.msra.mxu0 %v119
    %137 = vmatpush.msra.mxu0 %v118
    %138 = vmatpush.msra.mxu0 %v117
    %139 = vmatpush.msra.mxu0 %v116
    %140 = vmatpush.msra.mxu0 %v115
    %141 = vmatpush.msra.mxu0 %v114
    %142 = vmatpush.msra.mxu0 %v113
    %143 = vmatpush.msra.mxu0 %v112
    %144 = vmatpush.msra.mxu0 %v111
    %145 = vmatpush.msra.mxu0 %v110
    %146 = vmatmul.f32.gmra.mxu0 %v108
    %v147 = vpop.f32.mrf.mxu0
    %v148 = vadd.f32 %v128, %v147
    %149 = vdwg.mxu0
    %150 = vst [vmem:[#allocation8] sm:$0xff] %v108
    %151 = vst [vmem:[#allocation9] sm:$0xff] %v148
    // Predicated region
    $region34: #{tpu_custom_call.1} parent=1 // pred_check
      _
    $region35: #{tpu_custom_call.1} parent=1 // pred_check_branch
      %153 = sbr.rel (0) target = $region37
    $region36: #{tpu_custom_call.1} parent=1 // pred_region
      %155 = vsyncadd [#allocation4], 0
      %s157 = sshll.u32 [#allocation8], 4
      %s158 = int_to_ptr.vmem [resolvable:$true] %s157
      %s159 = sshll.u32 %s5, 4
      %s160 = int_to_ptr.hbm [resolvable:$true] %s159
      %162 = dma.vmem_to_hbm [thread:$0]  %s158, 128, %s160, [#allocation4]
    $region37: #{tpu_custom_call.1} parent=1 // pred_fallthru
      _
    // Predicated region
    $region38: #{tpu_custom_call.1} parent=1 // pred_check
      _
    $region39: #{tpu_custom_call.1} parent=1 // pred_check_branch
      %164 = sbr.rel (0) target = $region41
    $region40: #{tpu_custom_call.1} parent=1 // pred_region
      %166 = vsyncadd [#allocation10], 0
      %s168 = sshll.u32 [#allocation9], 4
      %s169 = int_to_ptr.vmem [resolvable:$true] %s168
      %s170 = sshll.u32 %s6, 4
      %s171 = int_to_ptr.hbm [resolvable:$true] %s170
      %173 = dma.vmem_to_hbm [thread:$0]  %s169, 128, %s171, [#allocation10]
    $region41: #{tpu_custom_call.1} parent=1 // pred_fallthru
      _
    // Predicated region
    $region42: #{tpu_custom_call.1} parent=1 // pred_check
      _
    $region43: #{tpu_custom_call.1} parent=1 // pred_check_branch
      %175 = sbr.rel (0) target = $region45
    $region44: #{tpu_custom_call.1} parent=1 // pred_region
      %177 = dma.done [#allocation4], 128
    $region45: #{tpu_custom_call.1} parent=1 // pred_fallthru
      _
    // Predicated region
    $region46: #{tpu_custom_call.1} parent=1 // pred_check
      _
    $region47: #{tpu_custom_call.1} parent=1 // pred_check_branch
      %179 = sbr.rel (0) target = $region49
    $region48: #{tpu_custom_call.1} parent=1 // pred_region
      %181 = dma.done [#allocation10], 128
    $region49: #{tpu_custom_call.1} parent=1 // pred_fallthru
      _
    %182 = vsyncpa [#allocation3], 1
    %183 = vsyncpa [#allocation6], 1
    %184 = vsyncpa [#allocation4], 1
    %185 = vsyncpa [#allocation10], 1

</llo_original>
